<compile_context>
chip_gen: v7x
topology: tpu7x:2x2x1
jax: 0.10.0
libtpu: 0.0.40
codegen_flags: <defaults>
</compile_context>

<pallas_src>
import jax
import jax.numpy as jnp
from jax.experimental import pallas as pl
from jax.experimental.pallas import tpu as pltpu

EPS = 1e-5
NEG_SLOPE = 0.2


def _dis_block_kernel(x_ref, w_ref, o_ref):
    # x_ref: (1, 9, Cin, S)    bf16 stride-2 tap slices of the padded input
    # w_ref: (9, Cout_t, Cin)  bf16 per-tap conv weights (t = kh*3 + kw)
    # o_ref: (1, Cout_t, S)
    n_taps = x_ref.shape[1]
    co_t = w_ref.shape[1]
    s = x_ref.shape[-1]

    # 3x3 stride-2 conv as 9 accumulating (Cout_t,Cin) x (Cin,S) matmuls, f32 acc.
    acc = jnp.zeros((co_t, s), jnp.float32)
    for t in range(n_taps):
        acc = acc + jnp.dot(w_ref[t], x_ref[0, t],
                            preferred_element_type=jnp.float32)

    # InstanceNorm2d(affine=False): per-channel stats over spatial dim S,
    # single pass sum/sumsq, biased variance, eps = 1e-5.  (Conv bias would be
    # cancelled here, so it is never added.)
    inv_s = 1.0 / s
    mean = jnp.sum(acc, axis=1, keepdims=True) * inv_s           # (Cout_t, 1)
    mean_sq = jnp.sum(acc * acc, axis=1, keepdims=True) * inv_s  # (Cout_t, 1)
    var = mean_sq - mean * mean
    yn = (acc - mean) * jax.lax.rsqrt(var + EPS)

    # LeakyReLU(0.2)
    o_ref[0] = jnp.where(yn >= 0, yn, NEG_SLOPE * yn).astype(o_ref.dtype)


def dis_block_forward(x_nchw, weight, bias=None, *, use_bf16=True):
    """x: (N, Cin, H, W), weight: (Cout, Cin, 3, 3), bias: (Cout,) or None.

    Returns (N, Cout, Ho, Wo).  `bias` is accepted for API parity with the PyTorch
    module but unused: InstanceNorm(affine=False) cancels a per-channel bias exactly.
    """
    del bias
    n, c_in, h, w = x_nchw.shape
    c_out = weight.shape[0]
    h_out = (h - 1) // 2 + 1
    w_out = (w - 1) // 2 + 1
    s = h_out * w_out

    compute_dtype = jnp.bfloat16 if use_bf16 else x_nchw.dtype

    # Host side: pad and pull out the nine stride-2 tap slices -> (N, 9, Cin, S).
    # The channel axis stays put and spatial stays on the last (lane) axis,
    # so no transposes / HBM shuffles are introduced.
    xp = jnp.pad(x_nchw, ((0, 0), (0, 0), (1, 1), (1, 1)))
    taps = []
    for kh in range(3):
        for kw in range(3):
            sl = xp[:, :, kh:kh + 2 * h_out - 1:2, kw:kw + 2 * w_out - 1:2]
            taps.append(sl.reshape(n, c_in, s))
    taps = jnp.stack(taps, axis=1).astype(compute_dtype)          # (N, 9, Cin, S)

    # (Cout, Cin, 3, 3) -> (9, Cout, Cin), tap-major (tiny weight transpose only).
    w_taps = weight.transpose(2, 3, 0, 1).reshape(9, c_out, c_in).astype(compute_dtype)

    # Cout tiling: second parallel grid axis (channels independent under IN).
    co_t = 256 if (c_out % 256 == 0) else c_out

    # Explicit VMEM budget: double-buffered in/weight/out blocks + f32 temporaries.
    in_elem = jnp.dtype(compute_dtype).itemsize
    out_elem = jnp.dtype(x_nchw.dtype).itemsize
    vmem_bytes = (2 * 9 * c_in * s * in_elem
                  + 2 * 9 * co_t * c_in * in_elem
                  + 2 * co_t * s * out_elem
                  + 2 * co_t * s * 4
                  + (4 << 20))
    vmem_limit = int(min(max(vmem_bytes, 16 << 20), 96 << 20))

    # TODO(synk): for very large spatial extents (blocks exceeding VMEM, esp. v7x's
    # 64 MiB), add an S-tile grid axis with a two-pass sum/sumsq -> normalize scheme
    # and build the taps in-kernel from the 4 stride-parity phase images
    # (1x input HBM traffic instead of 2.25x).

    out = pl.pallas_call(
        _dis_block_kernel,
        out_shape=jax.ShapeDtypeStruct((n, c_out, s), x_nchw.dtype),
        grid_spec=pltpu.PrefetchScalarGridSpec(
            num_scalar_prefetch=0,
            grid=(n, c_out // co_t),
            in_specs=[
                pl.BlockSpec((1, 9, c_in, s), lambda i, j: (i, 0, 0, 0)),
                pl.BlockSpec((9, co_t, c_in), lambda i, j: (0, j, 0)),
            ],
            out_specs=pl.BlockSpec((1, co_t, s), lambda i, j: (i, j, 0)),
        ),
        compiler_params=pltpu.CompilerParams(
            dimension_semantics=("parallel", "parallel"),
            vmem_limit_bytes=vmem_limit),
    )(taps, w_taps)

    # (N, Cout, S) -> (N, Cout, Ho, Wo): pure reshape, no transpose.
    return out.reshape(n, c_out, h_out, w_out)


def _reference(x_nchw, weight, bias):
    """Pure-JAX (f32) reference of the PyTorch block (conv WITH bias + IN + LeakyReLU)."""
    y = jax.lax.conv_general_dilated(
        x_nchw, weight, window_strides=(2, 2), padding=((1, 1), (1, 1)),
        dimension_numbers=("NCHW", "OIHW", "NCHW"))
    y = y + bias.reshape(1, -1, 1, 1)
    mean = jnp.mean(y, axis=(2, 3), keepdims=True)
    var = jnp.mean((y - mean) ** 2, axis=(2, 3), keepdims=True)
    yn = (y - mean) * jax.lax.rsqrt(var + EPS)
    return jnp.where(yn >= 0, yn, NEG_SLOPE * yn)


if __name__ == "__main__":
    key = jax.random.PRNGKey(0)
    k_x, k_w, k_b = jax.random.split(key, 3)

    N, C_IN, H, W = 2, 4, 16, 16
    C_OUT = 8

    x = jax.random.normal(k_x, (N, C_IN, H, W), dtype=jnp.float32)
    fan_in = C_IN * 9
    weight = jax.random.normal(k_w, (C_OUT, C_IN, 3, 3), dtype=jnp.float32) / jnp.sqrt(fan_in)
    bias = jax.random.normal(k_b, (C_OUT,), dtype=jnp.float32) * 0.1

    out = dis_block_forward(x, weight, bias)
    jax.block_until_ready(out)

    ref = _reference(x, weight, bias)
    assert out.shape == (N, C_OUT, H // 2, W // 2)
    # bf16 MXU inputs (f32 accumulation/stats) -> looser tolerance vs the f32 reference.
    assert jnp.allclose(out, ref, atol=3e-2, rtol=3e-2), float(jnp.max(jnp.abs(out - ref)))

    print("KERNEL_OK")
</pallas_src>

<mosaic_0001>
module attributes {stable_mosaic.version = 11 : i64} {
  func.func @_dis_block_kernel(%arg0: i32, %arg1: i32, %arg2: memref<1x9x4x64xbf16, #tpu.memory_space<vmem>>, %arg3: memref<9x8x4xbf16, #tpu.memory_space<vmem>>, %arg4: memref<1x8x64xf32, #tpu.memory_space<vmem>>) attributes {dimension_semantics = [#tpu.dimension_semantics<parallel>, #tpu.dimension_semantics<parallel>], iteration_bounds = array<i64: 2, 1>, scalar_prefetch = 0 : i64, scratch_operands = 0 : i64, tpu.core_type = #tpu.core_type<tc>, window_params = [{transform_indices = @transform_0, window_bounds = array<i64: 1, 9, 4, 64>}, {transform_indices = @transform_1, window_bounds = array<i64: 9, 8, 4>}, {transform_indices = @transform_2, window_bounds = array<i64: 1, 8, 64>}]} {
    %cst = arith.constant 0.000000e+00 : f32
    %0 = vector.broadcast %cst : f32 to vector<8x64xf32>
    %c0 = arith.constant 0 : index
    %c0_0 = arith.constant 0 : index
    %c0_1 = arith.constant 0 : index
    %1 = vector.load %arg3[%c0, %c0_0, %c0_1] : memref<9x8x4xbf16, #tpu.memory_space<vmem>>, vector<1x8x4xbf16>
    %2 = vector.shape_cast %1 : vector<1x8x4xbf16> to vector<8x4xbf16>
    %c0_2 = arith.constant 0 : index
    %c0_3 = arith.constant 0 : index
    %c0_4 = arith.constant 0 : index
    %c0_5 = arith.constant 0 : index
    %3 = vector.load %arg2[%c0_2, %c0_3, %c0_4, %c0_5] : memref<1x9x4x64xbf16, #tpu.memory_space<vmem>>, vector<1x1x4x64xbf16>
    %4 = vector.shape_cast %3 : vector<1x1x4x64xbf16> to vector<4x64xbf16>
    %cst_6 = arith.constant dense<0.000000e+00> : vector<8x64xf32>
    %5 = tpu.matmul %2, %4, %cst_6 {dimension_numbers = #tpu.dot_dimension_numbers<[1], [0], [0], [1], [0, 0, 1, 1], [], []>} : vector<8x4xbf16>, vector<4x64xbf16>, vector<8x64xf32> -> vector<8x64xf32>
    %6 = arith.addf %0, %5 : vector<8x64xf32>
    %c1 = arith.constant 1 : index
    %c0_7 = arith.constant 0 : index
    %c0_8 = arith.constant 0 : index
    %7 = vector.load %arg3[%c1, %c0_7, %c0_8] : memref<9x8x4xbf16, #tpu.memory_space<vmem>>, vector<1x8x4xbf16>
    %8 = vector.shape_cast %7 : vector<1x8x4xbf16> to vector<8x4xbf16>
    %c0_9 = arith.constant 0 : index
    %c1_10 = arith.constant 1 : index
    %c0_11 = arith.constant 0 : index
    %c0_12 = arith.constant 0 : index
    %9 = vector.load %arg2[%c0_9, %c1_10, %c0_11, %c0_12] : memref<1x9x4x64xbf16, #tpu.memory_space<vmem>>, vector<1x1x4x64xbf16>
    %10 = vector.shape_cast %9 : vector<1x1x4x64xbf16> to vector<4x64xbf16>
    %cst_13 = arith.constant dense<0.000000e+00> : vector<8x64xf32>
    %11 = tpu.matmul %8, %10, %cst_13 {dimension_numbers = #tpu.dot_dimension_numbers<[1], [0], [0], [1], [0, 0, 1, 1], [], []>} : vector<8x4xbf16>, vector<4x64xbf16>, vector<8x64xf32> -> vector<8x64xf32>
    %12 = arith.addf %6, %11 : vector<8x64xf32>
    %c2 = arith.constant 2 : index
    %c0_14 = arith.constant 0 : index
    %c0_15 = arith.constant 0 : index
    %13 = vector.load %arg3[%c2, %c0_14, %c0_15] : memref<9x8x4xbf16, #tpu.memory_space<vmem>>, vector<1x8x4xbf16>
    %14 = vector.shape_cast %13 : vector<1x8x4xbf16> to vector<8x4xbf16>
    %c0_16 = arith.constant 0 : index
    %c2_17 = arith.constant 2 : index
    %c0_18 = arith.constant 0 : index
    %c0_19 = arith.constant 0 : index
    %15 = vector.load %arg2[%c0_16, %c2_17, %c0_18, %c0_19] : memref<1x9x4x64xbf16, #tpu.memory_space<vmem>>, vector<1x1x4x64xbf16>
    %16 = vector.shape_cast %15 : vector<1x1x4x64xbf16> to vector<4x64xbf16>
    %cst_20 = arith.constant dense<0.000000e+00> : vector<8x64xf32>
    %17 = tpu.matmul %14, %16, %cst_20 {dimension_numbers = #tpu.dot_dimension_numbers<[1], [0], [0], [1], [0, 0, 1, 1], [], []>} : vector<8x4xbf16>, vector<4x64xbf16>, vector<8x64xf32> -> vector<8x64xf32>
    %18 = arith.addf %12, %17 : vector<8x64xf32>
    %c3 = arith.constant 3 : index
    %c0_21 = arith.constant 0 : index
    %c0_22 = arith.constant 0 : index
    %19 = vector.load %arg3[%c3, %c0_21, %c0_22] : memref<9x8x4xbf16, #tpu.memory_space<vmem>>, vector<1x8x4xbf16>
    %20 = vector.shape_cast %19 : vector<1x8x4xbf16> to vector<8x4xbf16>
    %c0_23 = arith.constant 0 : index
    %c3_24 = arith.constant 3 : index
    %c0_25 = arith.constant 0 : index
    %c0_26 = arith.constant 0 : index
    %21 = vector.load %arg2[%c0_23, %c3_24, %c0_25, %c0_26] : memref<1x9x4x64xbf16, #tpu.memory_space<vmem>>, vector<1x1x4x64xbf16>
    %22 = vector.shape_cast %21 : vector<1x1x4x64xbf16> to vector<4x64xbf16>
    %cst_27 = arith.constant dense<0.000000e+00> : vector<8x64xf32>
    %23 = tpu.matmul %20, %22, %cst_27 {dimension_numbers = #tpu.dot_dimension_numbers<[1], [0], [0], [1], [0, 0, 1, 1], [], []>} : vector<8x4xbf16>, vector<4x64xbf16>, vector<8x64xf32> -> vector<8x64xf32>
    %24 = arith.addf %18, %23 : vector<8x64xf32>
    %c4 = arith.constant 4 : index
    %c0_28 = arith.constant 0 : index
    %c0_29 = arith.constant 0 : index
    %25 = vector.load %arg3[%c4, %c0_28, %c0_29] : memref<9x8x4xbf16, #tpu.memory_space<vmem>>, vector<1x8x4xbf16>
    %26 = vector.shape_cast %25 : vector<1x8x4xbf16> to vector<8x4xbf16>
    %c0_30 = arith.constant 0 : index
    %c4_31 = arith.constant 4 : index
    %c0_32 = arith.constant 0 : index
    %c0_33 = arith.constant 0 : index
    %27 = vector.load %arg2[%c0_30, %c4_31, %c0_32, %c0_33] : memref<1x9x4x64xbf16, #tpu.memory_space<vmem>>, vector<1x1x4x64xbf16>
    %28 = vector.shape_cast %27 : vector<1x1x4x64xbf16> to vector<4x64xbf16>
    %cst_34 = arith.constant dense<0.000000e+00> : vector<8x64xf32>
    %29 = tpu.matmul %26, %28, %cst_34 {dimension_numbers = #tpu.dot_dimension_numbers<[1], [0], [0], [1], [0, 0, 1, 1], [], []>} : vector<8x4xbf16>, vector<4x64xbf16>, vector<8x64xf32> -> vector<8x64xf32>
    %30 = arith.addf %24, %29 : vector<8x64xf32>
    %c5 = arith.constant 5 : index
    %c0_35 = arith.constant 0 : index
    %c0_36 = arith.constant 0 : index
    %31 = vector.load %arg3[%c5, %c0_35, %c0_36] : memref<9x8x4xbf16, #tpu.memory_space<vmem>>, vector<1x8x4xbf16>
    %32 = vector.shape_cast %31 : vector<1x8x4xbf16> to vector<8x4xbf16>
    %c0_37 = arith.constant 0 : index
    %c5_38 = arith.constant 5 : index
    %c0_39 = arith.constant 0 : index
    %c0_40 = arith.constant 0 : index
    %33 = vector.load %arg2[%c0_37, %c5_38, %c0_39, %c0_40] : memref<1x9x4x64xbf16, #tpu.memory_space<vmem>>, vector<1x1x4x64xbf16>
    %34 = vector.shape_cast %33 : vector<1x1x4x64xbf16> to vector<4x64xbf16>
    %cst_41 = arith.constant dense<0.000000e+00> : vector<8x64xf32>
    %35 = tpu.matmul %32, %34, %cst_41 {dimension_numbers = #tpu.dot_dimension_numbers<[1], [0], [0], [1], [0, 0, 1, 1], [], []>} : vector<8x4xbf16>, vector<4x64xbf16>, vector<8x64xf32> -> vector<8x64xf32>
    %36 = arith.addf %30, %35 : vector<8x64xf32>
    %c6 = arith.constant 6 : index
    %c0_42 = arith.constant 0 : index
    %c0_43 = arith.constant 0 : index
    %37 = vector.load %arg3[%c6, %c0_42, %c0_43] : memref<9x8x4xbf16, #tpu.memory_space<vmem>>, vector<1x8x4xbf16>
    %38 = vector.shape_cast %37 : vector<1x8x4xbf16> to vector<8x4xbf16>
    %c0_44 = arith.constant 0 : index
    %c6_45 = arith.constant 6 : index
    %c0_46 = arith.constant 0 : index
    %c0_47 = arith.constant 0 : index
    %39 = vector.load %arg2[%c0_44, %c6_45, %c0_46, %c0_47] : memref<1x9x4x64xbf16, #tpu.memory_space<vmem>>, vector<1x1x4x64xbf16>
    %40 = vector.shape_cast %39 : vector<1x1x4x64xbf16> to vector<4x64xbf16>
    %cst_48 = arith.constant dense<0.000000e+00> : vector<8x64xf32>
    %41 = tpu.matmul %38, %40, %cst_48 {dimension_numbers = #tpu.dot_dimension_numbers<[1], [0], [0], [1], [0, 0, 1, 1], [], []>} : vector<8x4xbf16>, vector<4x64xbf16>, vector<8x64xf32> -> vector<8x64xf32>
    %42 = arith.addf %36, %41 : vector<8x64xf32>
    %c7 = arith.constant 7 : index
    %c0_49 = arith.constant 0 : index
    %c0_50 = arith.constant 0 : index
    %43 = vector.load %arg3[%c7, %c0_49, %c0_50] : memref<9x8x4xbf16, #tpu.memory_space<vmem>>, vector<1x8x4xbf16>
    %44 = vector.shape_cast %43 : vector<1x8x4xbf16> to vector<8x4xbf16>
    %c0_51 = arith.constant 0 : index
    %c7_52 = arith.constant 7 : index
    %c0_53 = arith.constant 0 : index
    %c0_54 = arith.constant 0 : index
    %45 = vector.load %arg2[%c0_51, %c7_52, %c0_53, %c0_54] : memref<1x9x4x64xbf16, #tpu.memory_space<vmem>>, vector<1x1x4x64xbf16>
    %46 = vector.shape_cast %45 : vector<1x1x4x64xbf16> to vector<4x64xbf16>
    %cst_55 = arith.constant dense<0.000000e+00> : vector<8x64xf32>
    %47 = tpu.matmul %44, %46, %cst_55 {dimension_numbers = #tpu.dot_dimension_numbers<[1], [0], [0], [1], [0, 0, 1, 1], [], []>} : vector<8x4xbf16>, vector<4x64xbf16>, vector<8x64xf32> -> vector<8x64xf32>
    %48 = arith.addf %42, %47 : vector<8x64xf32>
    %c8 = arith.constant 8 : index
    %c0_56 = arith.constant 0 : index
    %c0_57 = arith.constant 0 : index
    %49 = vector.load %arg3[%c8, %c0_56, %c0_57] : memref<9x8x4xbf16, #tpu.memory_space<vmem>>, vector<1x8x4xbf16>
    %50 = vector.shape_cast %49 : vector<1x8x4xbf16> to vector<8x4xbf16>
    %c0_58 = arith.constant 0 : index
    %c8_59 = arith.constant 8 : index
    %c0_60 = arith.constant 0 : index
    %c0_61 = arith.constant 0 : index
    %51 = vector.load %arg2[%c0_58, %c8_59, %c0_60, %c0_61] : memref<1x9x4x64xbf16, #tpu.memory_space<vmem>>, vector<1x1x4x64xbf16>
    %52 = vector.shape_cast %51 : vector<1x1x4x64xbf16> to vector<4x64xbf16>
    %cst_62 = arith.constant dense<0.000000e+00> : vector<8x64xf32>
    %53 = tpu.matmul %50, %52, %cst_62 {dimension_numbers = #tpu.dot_dimension_numbers<[1], [0], [0], [1], [0, 0, 1, 1], [], []>} : vector<8x4xbf16>, vector<4x64xbf16>, vector<8x64xf32> -> vector<8x64xf32>
    %54 = arith.addf %48, %53 : vector<8x64xf32>
    %cst_63 = arith.constant dense<0.000000e+00> : vector<8xf32>
    %55 = vector.multi_reduction <add>, %54, %cst_63 [1] : vector<8x64xf32> to vector<8xf32>
    %56 = vector.shape_cast %55 : vector<8xf32> to vector<8x1xf32>
    %cst_64 = arith.constant 1.562500e-02 : f32
    %57 = vector.broadcast %cst_64 : f32 to vector<8x1xf32>
    %58 = arith.mulf %56, %57 : vector<8x1xf32>
    %59 = arith.mulf %54, %54 : vector<8x64xf32>
    %cst_65 = arith.constant dense<0.000000e+00> : vector<8xf32>
    %60 = vector.multi_reduction <add>, %59, %cst_65 [1] : vector<8x64xf32> to vector<8xf32>
    %61 = vector.shape_cast %60 : vector<8xf32> to vector<8x1xf32>
    %cst_66 = arith.constant 1.562500e-02 : f32
    %62 = vector.broadcast %cst_66 : f32 to vector<8x1xf32>
    %63 = arith.mulf %61, %62 : vector<8x1xf32>
    %64 = arith.mulf %58, %58 : vector<8x1xf32>
    %65 = arith.subf %63, %64 : vector<8x1xf32>
    %66 = vector.broadcast %58 : vector<8x1xf32> to vector<8x64xf32>
    %67 = arith.subf %54, %66 : vector<8x64xf32>
    %cst_67 = arith.constant 9.99999974E-6 : f32
    %68 = vector.broadcast %cst_67 : f32 to vector<8x1xf32>
    %69 = arith.addf %65, %68 : vector<8x1xf32>
    %70 = math.rsqrt %69 : vector<8x1xf32>
    %71 = vector.broadcast %70 : vector<8x1xf32> to vector<8x64xf32>
    %72 = arith.mulf %67, %71 : vector<8x64xf32>
    %cst_68 = arith.constant 0.000000e+00 : f32
    %73 = vector.broadcast %cst_68 : f32 to vector<8x64xf32>
    %74 = arith.cmpf oge, %72, %73 : vector<8x64xf32>
    %cst_69 = arith.constant 2.000000e-01 : f32
    %75 = vector.broadcast %cst_69 : f32 to vector<8x64xf32>
    %76 = arith.mulf %75, %72 : vector<8x64xf32>
    %77 = arith.select %74, %72, %76 : vector<8x64xi1>, vector<8x64xf32>
    %c0_70 = arith.constant 0 : index
    %c0_71 = arith.constant 0 : index
    %c0_72 = arith.constant 0 : index
    %78 = vector.load %arg4[%c0_70, %c0_71, %c0_72] : memref<1x8x64xf32, #tpu.memory_space<vmem>>, vector<1x8x64xf32>
    %79 = vector.shape_cast %78 : vector<1x8x64xf32> to vector<8x64xf32>
    %80 = vector.shape_cast %77 : vector<8x64xf32> to vector<1x8x64xf32>
    tpu.vector_store %arg4[%c0_70, %c0_71, %c0_72], %80 {strides = array<i32>} : memref<1x8x64xf32, #tpu.memory_space<vmem>>, vector<1x8x64xf32>,
    return
  }
  func.func @transform_0(%arg0: i32, %arg1: i32) -> (i32, i32, i32, i32) {
    %c0_i32 = arith.constant 0 : i32
    %c0_i32_0 = arith.constant 0 : i32
    %c0_i32_1 = arith.constant 0 : i32
    %c0_i32_2 = arith.constant 0 : i32
    return %arg0, %c0_i32, %c0_i32_0, %c0_i32_1 : i32, i32, i32, i32
  }
  func.func @transform_1(%arg0: i32, %arg1: i32) -> (i32, i32, i32) {
    %c0_i32 = arith.constant 0 : i32
    %c0_i32_0 = arith.constant 0 : i32
    %c0_i32_1 = arith.constant 0 : i32
    return %c0_i32, %arg1, %c0_i32_0 : i32, i32, i32
  }
  func.func @transform_2(%arg0: i32, %arg1: i32) -> (i32, i32, i32) {
    %c0_i32 = arith.constant 0 : i32
    %c0_i32_0 = arith.constant 0 : i32
    return %arg0, %arg1, %c0_i32 : i32, i32, i32
  }
}

</mosaic_0001>

<llo_original>
// kernel: tpu_custom_call.1
$region0: #{tpu_custom_call.1}
  #allocation0 [shape = 'u32[]', space=smem, size = 0x4, offset = 0x4, fixed_abs, tag = 'smem constant byte address 0x4 - core index']
  #allocation1 [shape = 'u32[144,128]{1,0:T(1,128)}', space=vmem, size = 0x12000, scoped, tag = 'internal scratch']
  %s0 = inlined_call_operand.vmem [shape: bf16[2,9,4,64], index: 0, kind: input, shape index: {}]
  %s1 = inlined_call_operand.vmem [shape: bf16[9,8,4], index: 1, kind: input, shape index: {}]
  %s2 = inlined_call_operand.hbm [shape: f32[2,8,64], index: 2, kind: output, shape index: {}]
  %s3 = sld [smem:[#allocation0]]
  $region41: #{tpu_custom_call.1} parent=0
    _
  %s5 = ssub.s32 1, %s3
  %s6 = scalar_select 0, %s5, %s3
  $region1: #{tpu_custom_call.1} parent=0
    #allocation2 [shape = 'u8[8192]{0}', space=vmem, size = 0x2000, scoped, tag = 'output window, operand 0']
    #allocation3 [shape = 's32[2]{0}', space=sflag, size = 0x8, scoped, tag = 'scoped memory for tpu_custom_call.1']
    %7 = vsyncpa [#allocation3], 0
    %s8 = scalar_lea.sflag [#allocation3], 1
    %9 = vsyncpa %s8, 0
    loop: start=0, step=1, limit=4
    $region2: #{tpu_custom_call.1} parent=1 // loop_pre_header
      _
    $region3: #{tpu_custom_call.1} parent=1 // loop_header
      %s11 = sphi 0, %s15
      %p12 = scmp.ge.s32.totalorder %s11, 4
      %s18 = sphi 0, %s30
      %s19 = sphi 0, %s26
      %s20 = sphi 0, %s18
      %s21 = sphi 0, %s19
      %s22 = sphi 0, %s20
      %s23 = sphi 0, %s21
      %s33 = sphi 0, %s35
      %s36 = sphi 0, %s33
      %s37 = sphi 0, %s36
      %s53 = sphi 0, %s37
      %s59 = sphi 0, %s61
      %s62 = sphi 0, %s59
      %s63 = sphi 0, %s62
      %s79 = sphi 0, %s63
      %s87 = sphi 0, %s89
      %s90 = sphi 0, %s87
      %s91 = sphi 0, %s90
      %s107 = sphi 0, %s91
    $region4: #{tpu_custom_call.1} parent=1 // loop_header_branch
      %14 = sbr.rel (%p12) target = $region8
    $region5: #{tpu_custom_call.1} parent=1 // loop_body
      %s16 = ssub.s32 %s11, 1
      %s17 = ssub.s32 %s11, 2
      %s24 = sadd.s32 1, %s19
      %p25 = scmp.ge.s32.totalorder %s24, 1
      %s26 = scalar_select %p25, 0, %s24
      %s27 = sadd.s32 1, %s18
      %s28 = scalar_select %p25, %s27, %s18
      %p29 = scmp.ge.s32.totalorder %s28, 2
      %s30 = scalar_select %p29, 0, %s28
      %s31 = ssub.s32 %s18, %s30
      %p32 = scmp.eq.s32.totalorder %s31, 0
      %s34 = sadd.s32 %s33, 1
      %s35 = scalar_select %p32, %s33, %s34
      %p38 = pneg %p32
      %p39 = scmp.eq.s32.totalorder %s11, 1
      %p40 = por %p38, %p39
      %p41 = scmp.ne.s32.totalorder %s33, %s36
      %p42 = scmp.eq.s32.totalorder %s11, 0
      %p43 = por %p41, %p42
      %p44 = scmp.ne.s32.totalorder %s33, %s36
      %p45 = scmp.eq.s32.totalorder %s16, 1
      %p46 = por %p44, %p45
      %p47 = scmp.ne.s32.totalorder %s36, %s37
      %p48 = scmp.eq.s32.totalorder %s16, 0
      %p49 = por %p47, %p48
      %p50 = scmp.ne.s32.totalorder %s36, %s37
      %p51 = scmp.eq.s32.totalorder %s17, 1
      %p52 = por %p50, %p51
      %p54 = scmp.ne.s32.totalorder %s37, %s53
      %p55 = scmp.eq.s32.totalorder %s17, 0
      %p56 = por %p54, %p55
      %s57 = ssub.s32 %s19, %s26
      %p58 = scmp.eq.s32.totalorder %s57, 0
      %s60 = sadd.s32 %s59, 1
      %s61 = scalar_select %p58, %s59, %s60
      %p64 = pneg %p58
      %p65 = scmp.eq.s32.totalorder %s11, 1
      %p66 = por %p64, %p65
      %p67 = scmp.ne.s32.totalorder %s59, %s62
      %p68 = scmp.eq.s32.totalorder %s11, 0
      %p69 = por %p67, %p68
      %p70 = scmp.ne.s32.totalorder %s59, %s62
      %p71 = scmp.eq.s32.totalorder %s16, 1
      %p72 = por %p70, %p71
      %p73 = scmp.ne.s32.totalorder %s62, %s63
      %p74 = scmp.eq.s32.totalorder %s16, 0
      %p75 = por %p73, %p74
      %p76 = scmp.ne.s32.totalorder %s62, %s63
      %p77 = scmp.eq.s32.totalorder %s17, 1
      %p78 = por %p76, %p77
      %p80 = scmp.ne.s32.totalorder %s63, %s79
      %p81 = scmp.eq.s32.totalorder %s17, 0
      %p82 = por %p80, %p81
      %s83 = ssub.s32 %s18, %s30
      %s84 = ssub.s32 %s19, %s26
      %s85 = sor.u32 %s83, %s84
      %p86 = scmp.eq.s32.totalorder %s85, 0
      %s88 = sadd.s32 %s87, 1
      %s89 = scalar_select %p86, %s87, %s88
      %p92 = pneg %p86
      %p93 = scmp.eq.s32.totalorder %s11, 1
      %p94 = por %p92, %p93
      %p95 = scmp.ne.s32.totalorder %s87, %s90
      %p96 = scmp.eq.s32.totalorder %s11, 0
      %p97 = por %p95, %p96
      %p98 = scmp.ne.s32.totalorder %s87, %s90
      %p99 = scmp.eq.s32.totalorder %s16, 1
      %p100 = por %p98, %p99
      %p101 = scmp.ne.s32.totalorder %s90, %s91
      %p102 = scmp.eq.s32.totalorder %s16, 0
      %p103 = por %p101, %p102
      %p104 = scmp.ne.s32.totalorder %s90, %s91
      %p105 = scmp.eq.s32.totalorder %s17, 1
      %p106 = por %p104, %p105
      %p108 = scmp.ne.s32.totalorder %s91, %s107
      %p109 = scmp.eq.s32.totalorder %s17, 0
      %p110 = por %p108, %p109
      %p111 = scmp.le.s32.totalorder 1, %s11
      %p112 = scmp.lt.s32.totalorder %s11, 3
      %p113 = pnand %p111, %p112
      %p114 = pneg %p113
      // Predicated region
      $region9: #{tpu_custom_call.1} parent=5 // pred_check
        _
      $region10: #{tpu_custom_call.1} parent=5 // pred_check_branch
        %116 = sbr.rel (%p113) target = $region12
      $region11: #{tpu_custom_call.1} parent=5 // pred_region
        %s117 = ssub.s32 %s11, 1
        // Predicated region
        $region13: #{tpu_custom_call.1} parent=11 // pred_check
          %p118 = pneg %p75
        $region14: #{tpu_custom_call.1} parent=11 // pred_check_branch
          %120 = sbr.rel (%p118) target = $region16
        $region15: #{tpu_custom_call.1} parent=11 // pred_region
          %p121 = scmp.lt.s32.totalorder %s21, 0
          %s122 = scalar_select %p121, %s21, 0
          %s123 = smul.addr %s122, 4
          %s124 = scalar_lea.vmem %s1, %s123
        $region16: #{tpu_custom_call.1} parent=11 // pred_fallthru
          _
      $region12: #{tpu_custom_call.1} parent=5 // pred_fallthru
        _
      %p125 = scmp.lt.s32.totalorder %s11, 2
      // Predicated region
      $region17: #{tpu_custom_call.1} parent=5 // pred_check
        %p126 = pneg %p125
      $region18: #{tpu_custom_call.1} parent=5 // pred_check_branch
        %128 = sbr.rel (%p126) target = $region20
      $region19: #{tpu_custom_call.1} parent=5 // pred_region
        // Predicated region
        $region21: #{tpu_custom_call.1} parent=19 // pred_check
          %p129 = pneg %p43
        $region22: #{tpu_custom_call.1} parent=19 // pred_check_branch
          %131 = sbr.rel (%p129) target = $region24
        $region23: #{tpu_custom_call.1} parent=19 // pred_region
          %p132 = scmp.lt.s32.totalorder %s18, 1
          %s133 = scalar_select %p132, %s18, 1
          %s134 = smul.addr %s133, 9
          %s135 = smul.addr %s134, 2
          %s136 = scalar_lea.vmem %s0, %s135
        $region24: #{tpu_custom_call.1} parent=19 // pred_fallthru
          _
      $region20: #{tpu_custom_call.1} parent=5 // pred_fallthru
        _
      %p137 = scmp.le.s32.totalorder 1, %s11
      %p138 = scmp.lt.s32.totalorder %s11, 3
      %p139 = pnand %p137, %p138
      %p140 = pneg %p139
      // Predicated region
      $region25: #{tpu_custom_call.1} parent=5 // pred_check
        _
      $region26: #{tpu_custom_call.1} parent=5 // pred_check_branch
        %142 = sbr.rel (%p139) target = $region28
      $region27: #{tpu_custom_call.1} parent=5 // pred_region
        %s143 = ssub.s32 %s11, 1
        %p144 = scmp.lt.s32.totalorder %s20, 1
        %s145 = scalar_select %p144, %s20, 1
        %s146 = smul.addr %s145, 9
        %s147 = smul.addr %s146, 2
        %s148 = scalar_lea.vmem %s0, %s147
        %p149 = pneg %p49
        %p150 = pneg %p46
        %p151 = scmp.lt.s32.totalorder %s21, 0
        %s152 = scalar_select %p151, %s21, 0
        %s153 = smul.addr %s152, 4
        %s154 = scalar_lea.vmem %s1, %s153
        %p155 = pneg %p75
        %p156 = pneg %p72
        %p157 = pneg %p103
        %p158 = pneg %p100
        %s159 = sand.u32 %s90, 1
        %s160 = scalar_lea.sflag [#allocation3], %s159
        %s161 = sand.u32 %s90, 1
        %s162 = smul.addr %s161, 8
        %s163 = scalar_lea.vmem [#allocation2], %s162
        %p164 = scmp.lt.s32.totalorder %s20, 1
        %s165 = scalar_select %p164, %s20, 1
        %s166 = smul.addr %s165, 9
        %s167 = smul.addr %s166, 2
        %s168 = scalar_lea.vmem %s0, %s167
        %p169 = scmp.lt.s32.totalorder %s21, 0
        %s170 = scalar_select %p169, %s21, 0
        %s171 = smul.addr %s170, 4
        %s172 = scalar_lea.vmem %s1, %s171
        %v174 = vld [vmem:[%s172] sm:$0xf]
        %v175 = vld [vmem:[%s168] sm:$0x3]
        %s176 = scalar_lea.vmem %s172, 4
        %v177 = vld [vmem:[%s176] sm:$0xf]
        %s178 = scalar_lea.vmem %s168, 2
        %v179 = vld [vmem:[%s178] sm:$0x3]
        %vm180 = vcmask 31744
        %v182 = vsel %vm180, %v177, 0
        %vm184 = vcmask 1041408
        %v186 = vsel %vm184, %v179, 0
        %188 = vmatprep.subr.bf16.mxu0 0
        %189 = vmatpush1.bf16.msra.mxu0 %v186
        %190 = vmatprep.subr.bf16.mxu0 0
        %191 = vmatpush1.bf16.msra.mxu0 0
        %192 = vmatprep.subr.bf16.mxu0 0
        %193 = vmatpush1.bf16.msra.mxu0 0
        %194 = vmatprep.subr.bf16.mxu0 0
        %195 = vmatpush1.bf16.msra.mxu0 0
        %196 = vmatprep.subr.bf16.mxu0 0
        %197 = vmatpush1.bf16.msra.mxu0 0
        %198 = vmatprep.subr.bf16.mxu0 0
        %199 = vmatpush1.bf16.msra.mxu0 0
        %200 = vmatprep.subr.bf16.mxu0 0
        %201 = vmatpush1.bf16.msra.mxu0 0
        %202 = vmatprep.subr.bf16.mxu0 0
        %203 = vmatpush1.bf16.msra.mxu0 0
        %204 = vmatprep.subr.bf16.mxu0 0
        %205 = vmatpush1.bf16.msra.mxu0 0
        %206 = vmatprep.subr.bf16.mxu0 0
        %207 = vmatpush1.bf16.msra.mxu0 0
        %208 = vmatprep.subr.bf16.mxu0 0
        %209 = vmatpush1.bf16.msra.mxu0 0
        %210 = vmatprep.subr.bf16.mxu0 0
        %211 = vmatpush1.bf16.msra.mxu0 0
        %212 = vmatprep.subr.bf16.mxu0 0
        %213 = vmatpush1.bf16.msra.mxu0 0
        %214 = vmatprep.subr.bf16.mxu0 0
        %215 = vmatpush1.bf16.msra.mxu0 0
        %216 = vmatprep.subr.bf16.mxu0 0
        %217 = vmatpush1.bf16.msra.mxu0 0
        %218 = vmatprep.subr.bf16.mxu0 0
        %219 = vmatpush1.bf16.msra.mxu0 0
        %220 = vmatprep.mubr.bf16.mxu0 0
        %221 = vmatmul.mubr.bf16.gmra.mrb[0].mxu0 %v182
        %v222 = vpop.f32.mrb[0].mxu0
        %v223 = vadd.f32 0.0, %v222
        %v224 = vpop.f32.mrb[0].mxu0
        %v225 = vpop.f32.mrb[0].mxu0
        %v226 = vpop.f32.mrb[0].mxu0
        %227 = vdwg.mxu0
        %v229 = vsel %vm180, %v174, 0
        %v232 = vsel %vm184, %v175, 0
        %234 = vmatprep.subr.bf16.mxu0 0
        %235 = vmatpush1.bf16.msra.mxu0 %v232
        %236 = vmatprep.subr.bf16.mxu0 0
        %237 = vmatpush1.bf16.msra.mxu0 0
        %238 = vmatprep.subr.bf16.mxu0 0
        %239 = vmatpush1.bf16.msra.mxu0 0
        %240 = vmatprep.subr.bf16.mxu0 0
        %241 = vmatpush1.bf16.msra.mxu0 0
        %242 = vmatprep.subr.bf16.mxu0 0
        %243 = vmatpush1.bf16.msra.mxu0 0
        %244 = vmatprep.subr.bf16.mxu0 0
        %245 = vmatpush1.bf16.msra.mxu0 0
        %246 = vmatprep.subr.bf16.mxu0 0
        %247 = vmatpush1.bf16.msra.mxu0 0
        %248 = vmatprep.subr.bf16.mxu0 0
        %249 = vmatpush1.bf16.msra.mxu0 0
        %250 = vmatprep.subr.bf16.mxu0 0
        %251 = vmatpush1.bf16.msra.mxu0 0
        %252 = vmatprep.subr.bf16.mxu0 0
        %253 = vmatpush1.bf16.msra.mxu0 0
        %254 = vmatprep.subr.bf16.mxu0 0
        %255 = vmatpush1.bf16.msra.mxu0 0
        %256 = vmatprep.subr.bf16.mxu0 0
        %257 = vmatpush1.bf16.msra.mxu0 0
        %258 = vmatprep.subr.bf16.mxu0 0
        %259 = vmatpush1.bf16.msra.mxu0 0
        %260 = vmatprep.subr.bf16.mxu0 0
        %261 = vmatpush1.bf16.msra.mxu0 0
        %262 = vmatprep.subr.bf16.mxu0 0
        %263 = vmatpush1.bf16.msra.mxu0 0
        %264 = vmatprep.subr.bf16.mxu0 0
        %265 = vmatpush1.bf16.msra.mxu0 0
        %266 = vmatprep.mubr.bf16.mxu0 0
        %267 = vmatmul.mubr.bf16.gmra.mrb[0].mxu0 %v229
        %v268 = vpop.f32.mrb[0].mxu0
        %v269 = vadd.f32 %v223, %v268
        %v270 = vpop.f32.mrb[0].mxu0
        %v271 = vpop.f32.mrb[0].mxu0
        %v272 = vpop.f32.mrb[0].mxu0
        %273 = vdwg.mxu0
        %s274 = scalar_lea.vmem %s172, 8
        %v275 = vld [vmem:[%s274] sm:$0xf]
        %s276 = scalar_lea.vmem %s168, 4
        %v277 = vld [vmem:[%s276] sm:$0x3]
        %v279 = vsel %vm180, %v275, 0
        %v282 = vsel %vm184, %v277, 0
        %284 = vmatprep.subr.bf16.mxu0 0
        %285 = vmatpush1.bf16.msra.mxu0 %v282
        %286 = vmatprep.subr.bf16.mxu0 0
        %287 = vmatpush1.bf16.msra.mxu0 0
        %288 = vmatprep.subr.bf16.mxu0 0
        %289 = vmatpush1.bf16.msra.mxu0 0
        %290 = vmatprep.subr.bf16.mxu0 0
        %291 = vmatpush1.bf16.msra.mxu0 0
        %292 = vmatprep.subr.bf16.mxu0 0
        %293 = vmatpush1.bf16.msra.mxu0 0
        %294 = vmatprep.subr.bf16.mxu0 0
        %295 = vmatpush1.bf16.msra.mxu0 0
        %296 = vmatprep.subr.bf16.mxu0 0
        %297 = vmatpush1.bf16.msra.mxu0 0
        %298 = vmatprep.subr.bf16.mxu0 0
        %299 = vmatpush1.bf16.msra.mxu0 0
        %300 = vmatprep.subr.bf16.mxu0 0
        %301 = vmatpush1.bf16.msra.mxu0 0
        %302 = vmatprep.subr.bf16.mxu0 0
        %303 = vmatpush1.bf16.msra.mxu0 0
        %304 = vmatprep.subr.bf16.mxu0 0
        %305 = vmatpush1.bf16.msra.mxu0 0
        %306 = vmatprep.subr.bf16.mxu0 0
        %307 = vmatpush1.bf16.msra.mxu0 0
        %308 = vmatprep.subr.bf16.mxu0 0
        %309 = vmatpush1.bf16.msra.mxu0 0
        %310 = vmatprep.subr.bf16.mxu0 0
        %311 = vmatpush1.bf16.msra.mxu0 0
        %312 = vmatprep.subr.bf16.mxu0 0
        %313 = vmatpush1.bf16.msra.mxu0 0
        %314 = vmatprep.subr.bf16.mxu0 0
        %315 = vmatpush1.bf16.msra.mxu0 0
        %316 = vmatprep.mubr.bf16.mxu0 0
        %317 = vmatmul.mubr.bf16.gmra.mrb[0].mxu0 %v279
        %v318 = vpop.f32.mrb[0].mxu0
        %v319 = vadd.f32 0.0, %v318
        %v320 = vpop.f32.mrb[0].mxu0
        %v321 = vpop.f32.mrb[0].mxu0
        %v322 = vpop.f32.mrb[0].mxu0
        %323 = vdwg.mxu0
        %v324 = vadd.f32 %v269, %v319
        %s325 = scalar_lea.vmem %s172, 12
        %v326 = vld [vmem:[%s325] sm:$0xf]
        %s327 = scalar_lea.vmem %s168, 6
        %v328 = vld [vmem:[%s327] sm:$0x3]
        %v330 = vsel %vm180, %v326, 0
        %v333 = vsel %vm184, %v328, 0
        %335 = vmatprep.subr.bf16.mxu0 0
        %336 = vmatpush1.bf16.msra.mxu0 %v333
        %337 = vmatprep.subr.bf16.mxu0 0
        %338 = vmatpush1.bf16.msra.mxu0 0
        %339 = vmatprep.subr.bf16.mxu0 0
        %340 = vmatpush1.bf16.msra.mxu0 0
        %341 = vmatprep.subr.bf16.mxu0 0
        %342 = vmatpush1.bf16.msra.mxu0 0
        %343 = vmatprep.subr.bf16.mxu0 0
        %344 = vmatpush1.bf16.msra.mxu0 0
        %345 = vmatprep.subr.bf16.mxu0 0
        %346 = vmatpush1.bf16.msra.mxu0 0
        %347 = vmatprep.subr.bf16.mxu0 0
        %348 = vmatpush1.bf16.msra.mxu0 0
        %349 = vmatprep.subr.bf16.mxu0 0
        %350 = vmatpush1.bf16.msra.mxu0 0
        %351 = vmatprep.subr.bf16.mxu0 0
        %352 = vmatpush1.bf16.msra.mxu0 0
        %353 = vmatprep.subr.bf16.mxu0 0
        %354 = vmatpush1.bf16.msra.mxu0 0
        %355 = vmatprep.subr.bf16.mxu0 0
        %356 = vmatpush1.bf16.msra.mxu0 0
        %357 = vmatprep.subr.bf16.mxu0 0
        %358 = vmatpush1.bf16.msra.mxu0 0
        %359 = vmatprep.subr.bf16.mxu0 0
        %360 = vmatpush1.bf16.msra.mxu0 0
        %361 = vmatprep.subr.bf16.mxu0 0
        %362 = vmatpush1.bf16.msra.mxu0 0
        %363 = vmatprep.subr.bf16.mxu0 0
        %364 = vmatpush1.bf16.msra.mxu0 0
        %365 = vmatprep.subr.bf16.mxu0 0
        %366 = vmatpush1.bf16.msra.mxu0 0
        %367 = vmatprep.mubr.bf16.mxu0 0
        %368 = vmatmul.mubr.bf16.gmra.mrb[0].mxu0 %v330
        %v369 = vpop.f32.mrb[0].mxu0
        %v370 = vadd.f32 0.0, %v369
        %v371 = vpop.f32.mrb[0].mxu0
        %v372 = vpop.f32.mrb[0].mxu0
        %v373 = vpop.f32.mrb[0].mxu0
        %374 = vdwg.mxu0
        %v375 = vadd.f32 %v324, %v370
        %s376 = scalar_lea.vmem %s172, 16
        %v377 = vld [vmem:[%s376] sm:$0xf]
        %s378 = scalar_lea.vmem %s168, 8
        %v379 = vld [vmem:[%s378] sm:$0x3]
        %v381 = vsel %vm180, %v377, 0
        %v384 = vsel %vm184, %v379, 0
        %386 = vmatprep.subr.bf16.mxu0 0
        %387 = vmatpush1.bf16.msra.mxu0 %v384
        %388 = vmatprep.subr.bf16.mxu0 0
        %389 = vmatpush1.bf16.msra.mxu0 0
        %390 = vmatprep.subr.bf16.mxu0 0
        %391 = vmatpush1.bf16.msra.mxu0 0
        %392 = vmatprep.subr.bf16.mxu0 0
        %393 = vmatpush1.bf16.msra.mxu0 0
        %394 = vmatprep.subr.bf16.mxu0 0
        %395 = vmatpush1.bf16.msra.mxu0 0
        %396 = vmatprep.subr.bf16.mxu0 0
        %397 = vmatpush1.bf16.msra.mxu0 0
        %398 = vmatprep.subr.bf16.mxu0 0
        %399 = vmatpush1.bf16.msra.mxu0 0
        %400 = vmatprep.subr.bf16.mxu0 0
        %401 = vmatpush1.bf16.msra.mxu0 0
        %402 = vmatprep.subr.bf16.mxu0 0
        %403 = vmatpush1.bf16.msra.mxu0 0
        %404 = vmatprep.subr.bf16.mxu0 0
        %405 = vmatpush1.bf16.msra.mxu0 0
        %406 = vmatprep.subr.bf16.mxu0 0
        %407 = vmatpush1.bf16.msra.mxu0 0
        %408 = vmatprep.subr.bf16.mxu0 0
        %409 = vmatpush1.bf16.msra.mxu0 0
        %410 = vmatprep.subr.bf16.mxu0 0
        %411 = vmatpush1.bf16.msra.mxu0 0
        %412 = vmatprep.subr.bf16.mxu0 0
        %413 = vmatpush1.bf16.msra.mxu0 0
        %414 = vmatprep.subr.bf16.mxu0 0
        %415 = vmatpush1.bf16.msra.mxu0 0
        %416 = vmatprep.subr.bf16.mxu0 0
        %417 = vmatpush1.bf16.msra.mxu0 0
        %418 = vmatprep.mubr.bf16.mxu0 0
        %419 = vmatmul.mubr.bf16.gmra.mrb[0].mxu0 %v381
        %v420 = vpop.f32.mrb[0].mxu0
        %v421 = vadd.f32 0.0, %v420
        %v422 = vpop.f32.mrb[0].mxu0
        %v423 = vpop.f32.mrb[0].mxu0
        %v424 = vpop.f32.mrb[0].mxu0
        %425 = vdwg.mxu0
        %v426 = vadd.f32 %v375, %v421
        %s427 = scalar_lea.vmem %s172, 20
        %v428 = vld [vmem:[%s427] sm:$0xf]
        %s429 = scalar_lea.vmem %s168, 10
        %v430 = vld [vmem:[%s429] sm:$0x3]
        %v432 = vsel %vm180, %v428, 0
        %v435 = vsel %vm184, %v430, 0
        %437 = vmatprep.subr.bf16.mxu0 0
        %438 = vmatpush1.bf16.msra.mxu0 %v435
        %439 = vmatprep.subr.bf16.mxu0 0
        %440 = vmatpush1.bf16.msra.mxu0 0
        %441 = vmatprep.subr.bf16.mxu0 0
        %442 = vmatpush1.bf16.msra.mxu0 0
        %443 = vmatprep.subr.bf16.mxu0 0
        %444 = vmatpush1.bf16.msra.mxu0 0
        %445 = vmatprep.subr.bf16.mxu0 0
        %446 = vmatpush1.bf16.msra.mxu0 0
        %447 = vmatprep.subr.bf16.mxu0 0
        %448 = vmatpush1.bf16.msra.mxu0 0
        %449 = vmatprep.subr.bf16.mxu0 0
        %450 = vmatpush1.bf16.msra.mxu0 0
        %451 = vmatprep.subr.bf16.mxu0 0
        %452 = vmatpush1.bf16.msra.mxu0 0
        %453 = vmatprep.subr.bf16.mxu0 0
        %454 = vmatpush1.bf16.msra.mxu0 0
        %455 = vmatprep.subr.bf16.mxu0 0
        %456 = vmatpush1.bf16.msra.mxu0 0
        %457 = vmatprep.subr.bf16.mxu0 0
        %458 = vmatpush1.bf16.msra.mxu0 0
        %459 = vmatprep.subr.bf16.mxu0 0
        %460 = vmatpush1.bf16.msra.mxu0 0
        %461 = vmatprep.subr.bf16.mxu0 0
        %462 = vmatpush1.bf16.msra.mxu0 0
        %463 = vmatprep.subr.bf16.mxu0 0
        %464 = vmatpush1.bf16.msra.mxu0 0
        %465 = vmatprep.subr.bf16.mxu0 0
        %466 = vmatpush1.bf16.msra.mxu0 0
        %467 = vmatprep.subr.bf16.mxu0 0
        %468 = vmatpush1.bf16.msra.mxu0 0
        %469 = vmatprep.mubr.bf16.mxu0 0
        %470 = vmatmul.mubr.bf16.gmra.mrb[0].mxu0 %v432
        %v471 = vpop.f32.mrb[0].mxu0
        %v472 = vadd.f32 0.0, %v471
        %v473 = vpop.f32.mrb[0].mxu0
        %v474 = vpop.f32.mrb[0].mxu0
        %v475 = vpop.f32.mrb[0].mxu0
        %476 = vdwg.mxu0
        %v477 = vadd.f32 %v426, %v472
        %s478 = scalar_lea.vmem %s172, 24
        %v479 = vld [vmem:[%s478] sm:$0xf]
        %s480 = scalar_lea.vmem %s168, 12
        %v481 = vld [vmem:[%s480] sm:$0x3]
        %v483 = vsel %vm180, %v479, 0
        %v486 = vsel %vm184, %v481, 0
        %488 = vmatprep.subr.bf16.mxu0 0
        %489 = vmatpush1.bf16.msra.mxu0 %v486
        %490 = vmatprep.subr.bf16.mxu0 0
        %491 = vmatpush1.bf16.msra.mxu0 0
        %492 = vmatprep.subr.bf16.mxu0 0
        %493 = vmatpush1.bf16.msra.mxu0 0
        %494 = vmatprep.subr.bf16.mxu0 0
        %495 = vmatpush1.bf16.msra.mxu0 0
        %496 = vmatprep.subr.bf16.mxu0 0
        %497 = vmatpush1.bf16.msra.mxu0 0
        %498 = vmatprep.subr.bf16.mxu0 0
        %499 = vmatpush1.bf16.msra.mxu0 0
        %500 = vmatprep.subr.bf16.mxu0 0
        %501 = vmatpush1.bf16.msra.mxu0 0
        %502 = vmatprep.subr.bf16.mxu0 0
        %503 = vmatpush1.bf16.msra.mxu0 0
        %504 = vmatprep.subr.bf16.mxu0 0
        %505 = vmatpush1.bf16.msra.mxu0 0
        %506 = vmatprep.subr.bf16.mxu0 0
        %507 = vmatpush1.bf16.msra.mxu0 0
        %508 = vmatprep.subr.bf16.mxu0 0
        %509 = vmatpush1.bf16.msra.mxu0 0
        %510 = vmatprep.subr.bf16.mxu0 0
        %511 = vmatpush1.bf16.msra.mxu0 0
        %512 = vmatprep.subr.bf16.mxu0 0
        %513 = vmatpush1.bf16.msra.mxu0 0
        %514 = vmatprep.subr.bf16.mxu0 0
        %515 = vmatpush1.bf16.msra.mxu0 0
        %516 = vmatprep.subr.bf16.mxu0 0
        %517 = vmatpush1.bf16.msra.mxu0 0
        %518 = vmatprep.subr.bf16.mxu0 0
        %519 = vmatpush1.bf16.msra.mxu0 0
        %520 = vmatprep.mubr.bf16.mxu0 0
        %521 = vmatmul.mubr.bf16.gmra.mrb[0].mxu0 %v483
        %v522 = vpop.f32.mrb[0].mxu0
        %v523 = vadd.f32 0.0, %v522
        %v524 = vpop.f32.mrb[0].mxu0
        %v525 = vpop.f32.mrb[0].mxu0
        %v526 = vpop.f32.mrb[0].mxu0
        %527 = vdwg.mxu0
        %v528 = vadd.f32 %v477, %v523
        %s529 = scalar_lea.vmem %s172, 28
        %v530 = vld [vmem:[%s529] sm:$0xf]
        %s531 = scalar_lea.vmem %s168, 14
        %v532 = vld [vmem:[%s531] sm:$0x3]
        %v534 = vsel %vm180, %v530, 0
        %v537 = vsel %vm184, %v532, 0
        %539 = vmatprep.subr.bf16.mxu0 0
        %540 = vmatpush1.bf16.msra.mxu0 %v537
        %541 = vmatprep.subr.bf16.mxu0 0
        %542 = vmatpush1.bf16.msra.mxu0 0
        %543 = vmatprep.subr.bf16.mxu0 0
        %544 = vmatpush1.bf16.msra.mxu0 0
        %545 = vmatprep.subr.bf16.mxu0 0
        %546 = vmatpush1.bf16.msra.mxu0 0
        %547 = vmatprep.subr.bf16.mxu0 0
        %548 = vmatpush1.bf16.msra.mxu0 0
        %549 = vmatprep.subr.bf16.mxu0 0
        %550 = vmatpush1.bf16.msra.mxu0 0
        %551 = vmatprep.subr.bf16.mxu0 0
        %552 = vmatpush1.bf16.msra.mxu0 0
        %553 = vmatprep.subr.bf16.mxu0 0
        %554 = vmatpush1.bf16.msra.mxu0 0
        %555 = vmatprep.subr.bf16.mxu0 0
        %556 = vmatpush1.bf16.msra.mxu0 0
        %557 = vmatprep.subr.bf16.mxu0 0
        %558 = vmatpush1.bf16.msra.mxu0 0
        %559 = vmatprep.subr.bf16.mxu0 0
        %560 = vmatpush1.bf16.msra.mxu0 0
        %561 = vmatprep.subr.bf16.mxu0 0
        %562 = vmatpush1.bf16.msra.mxu0 0
        %563 = vmatprep.subr.bf16.mxu0 0
        %564 = vmatpush1.bf16.msra.mxu0 0
        %565 = vmatprep.subr.bf16.mxu0 0
        %566 = vmatpush1.bf16.msra.mxu0 0
        %567 = vmatprep.subr.bf16.mxu0 0
        %568 = vmatpush1.bf16.msra.mxu0 0
        %569 = vmatprep.subr.bf16.mxu0 0
        %570 = vmatpush1.bf16.msra.mxu0 0
        %571 = vmatprep.mubr.bf16.mxu0 0
        %572 = vmatmul.mubr.bf16.gmra.mrb[0].mxu0 %v534
        %v573 = vpop.f32.mrb[0].mxu0
        %v574 = vadd.f32 0.0, %v573
        %v575 = vpop.f32.mrb[0].mxu0
        %v576 = vpop.f32.mrb[0].mxu0
        %v577 = vpop.f32.mrb[0].mxu0
        %578 = vdwg.mxu0
        %v579 = vadd.f32 %v528, %v574
        %s580 = scalar_lea.vmem %s172, 32
        %v581 = vld [vmem:[%s580] sm:$0xf]
        %s582 = scalar_lea.vmem %s168, 16
        %v583 = vld [vmem:[%s582] sm:$0x3]
        %v585 = vsel %vm180, %v581, 0
        %v588 = vsel %vm184, %v583, 0
        %590 = vmatprep.subr.bf16.mxu0 0
        %591 = vmatpush1.bf16.msra.mxu0 %v588
        %592 = vmatprep.subr.bf16.mxu0 0
        %593 = vmatpush1.bf16.msra.mxu0 0
        %594 = vmatprep.subr.bf16.mxu0 0
        %595 = vmatpush1.bf16.msra.mxu0 0
        %596 = vmatprep.subr.bf16.mxu0 0
        %597 = vmatpush1.bf16.msra.mxu0 0
        %598 = vmatprep.subr.bf16.mxu0 0
        %599 = vmatpush1.bf16.msra.mxu0 0
        %600 = vmatprep.subr.bf16.mxu0 0
        %601 = vmatpush1.bf16.msra.mxu0 0
        %602 = vmatprep.subr.bf16.mxu0 0
        %603 = vmatpush1.bf16.msra.mxu0 0
        %604 = vmatprep.subr.bf16.mxu0 0
        %605 = vmatpush1.bf16.msra.mxu0 0
        %606 = vmatprep.subr.bf16.mxu0 0
        %607 = vmatpush1.bf16.msra.mxu0 0
        %608 = vmatprep.subr.bf16.mxu0 0
        %609 = vmatpush1.bf16.msra.mxu0 0
        %610 = vmatprep.subr.bf16.mxu0 0
        %611 = vmatpush1.bf16.msra.mxu0 0
        %612 = vmatprep.subr.bf16.mxu0 0
        %613 = vmatpush1.bf16.msra.mxu0 0
        %614 = vmatprep.subr.bf16.mxu0 0
        %615 = vmatpush1.bf16.msra.mxu0 0
        %616 = vmatprep.subr.bf16.mxu0 0
        %617 = vmatpush1.bf16.msra.mxu0 0
        %618 = vmatprep.subr.bf16.mxu0 0
        %619 = vmatpush1.bf16.msra.mxu0 0
        %620 = vmatprep.subr.bf16.mxu0 0
        %621 = vmatpush1.bf16.msra.mxu0 0
        %622 = vmatprep.mubr.bf16.mxu0 0
        %623 = vmatmul.mubr.bf16.gmra.mrb[0].mxu0 %v585
        %v624 = vpop.f32.mrb[0].mxu0
        %v625 = vadd.f32 0.0, %v624
        %v626 = vpop.f32.mrb[0].mxu0
        %v627 = vpop.f32.mrb[0].mxu0
        %v628 = vpop.f32.mrb[0].mxu0
        %629 = vdwg.mxu0
        %v630 = vadd.f32 %v579, %v625
        %vm631 = vcmask 523264
        %v632 = vsel %vm631, %v630, 0.0
        %633 = vadd.xlane.f32.xlu0 %v632
        %v634 = vpop.xlane.xlu0 %633
        %v635 = vmul.f32 %v634, 0.015625
        %v636 = vmul.f32 %v630, %v630
        %v637 = vsel %vm631, %v636, 0.0
        %638 = vadd.xlane.f32.xlu0 %v637
        %v639 = vpop.xlane.xlu0 %638
        %v640 = vmul.f32 %v639, 0.015625
        %v641 = vmul.f32 %v635, %v635
        %v642 = vsub.f32 %v640, %v641
        %v643 = vsub.f32 %v630, %v635
        %v644 = vadd.f32 %v642, 1e-05
        %v645 = vrsqrt.pop %v644
        %v646 = vmul.f32 %v643, %v645
        %vm647 = vcmp.ge.f32.partialorder %v646, 0.0
        %v648 = vmul.f32 %v646, 0.2
        %v649 = vsel %vm647, %v646, %v648
        %650 = vst.msk [vmem:[%s163] sm:$0xff] %vm631, %v649
        %s651 = sand.u32 %s90, 1
        %s652 = scalar_lea.sflag [#allocation3], %s651
        %s653 = sand.u32 %s90, 1
        %s654 = smul.addr %s653, 8
        %s655 = scalar_lea.vmem [#allocation2], %s654
        // Predicated region
        $region29: #{tpu_custom_call.1} parent=27 // pred_check
          %p656 = pneg %p100
        $region30: #{tpu_custom_call.1} parent=27 // pred_check_branch
          %658 = sbr.rel (%p656) target = $region32
        $region31: #{tpu_custom_call.1} parent=27 // pred_region
          %s660 = ssub.s32 128, 128
          %661 = vsyncadd %s652, %s660
          %s662 = sadd.s32 %s21, %s20
          %s663 = smul.addr %s662, 128
          %s664 = scalar_lea.hbm %s2, %s663
          %s666 = sshll.u32 %s655, 4
          %s667 = int_to_ptr.vmem [resolvable:$true] %s666
          %669 = dma.vmem_to_hbm [thread:$0]  %s667, 128, %s664, %s652
        $region32: #{tpu_custom_call.1} parent=27 // pred_fallthru
          _
      $region28: #{tpu_custom_call.1} parent=5 // pred_fallthru
        _
      %p670 = scmp.le.s32.totalorder 2, %s11
      // Predicated region
      $region33: #{tpu_custom_call.1} parent=5 // pred_check
        %p671 = pneg %p670
      $region34: #{tpu_custom_call.1} parent=5 // pred_check_branch
        %673 = sbr.rel (%p671) target = $region36
      $region35: #{tpu_custom_call.1} parent=5 // pred_region
        %s674 = ssub.s32 %s11, 2
        // Predicated region
        $region37: #{tpu_custom_call.1} parent=35 // pred_check
          %p675 = pneg %p106
        $region38: #{tpu_custom_call.1} parent=35 // pred_check_branch
          %677 = sbr.rel (%p675) target = $region40
        $region39: #{tpu_custom_call.1} parent=35 // pred_region
          %s678 = sand.u32 %s91, 1
          %s679 = scalar_lea.sflag [#allocation3], %s678
          %s680 = sand.u32 %s91, 1
          %s681 = smul.addr %s680, 8
          %s682 = scalar_lea.vmem [#allocation2], %s681
          %683 = dma.done %s679, 128
        $region40: #{tpu_custom_call.1} parent=35 // pred_fallthru
          _
      $region36: #{tpu_custom_call.1} parent=5 // pred_fallthru
        _
    $region6: #{tpu_custom_call.1} parent=1 // loop_footer
      %s15 = sadd.s32 1, %s11
    $region7: #{tpu_custom_call.1} parent=1 // loop_footer_branch
      %10 = sbr.rel target = $region3
    $region8: #{tpu_custom_call.1} parent=1 // loop_exit
      _
    %684 = vsyncpa [#allocation3], 1
    %s685 = scalar_lea.sflag [#allocation3], 1
    %686 = vsyncpa %s685, 1

</llo_original>
